<compile_context>
chip_gen: v5e
topology: v5e:2x2
jax: 0.10.0
libtpu: 0.0.40
codegen_flags: <defaults>
</compile_context>

<pallas_src>
import functools

import jax
import jax.numpy as jnp
from jax.experimental import pallas as pl
from jax.experimental.pallas import tpu as pltpu


# ---------------------------------------------------------------------------
# Phase A / B kernel: one row-tile of  out = x @ w + b
# ---------------------------------------------------------------------------
def _matmul_bias_kernel(x_ref, w_ref, b_ref, o_ref):
    o_ref[...] = (jnp.dot(x_ref[...], w_ref[...],
                          preferred_element_type=jnp.float32)
                  + b_ref[...]).astype(o_ref.dtype)


def _pad_rows(a, multiple):
    rows = a.shape[0]
    rows_p = ((rows + multiple - 1) // multiple) * multiple
    if rows_p == rows:
        return a
    pad = [(0, rows_p - rows)] + [(0, 0)] * (a.ndim - 1)
    return jnp.pad(a, pad)


def _matmul_bias(x, w, b, out_dtype, tm_max=512):
    """out = x @ w + b, tiled over rows with a parallel Pallas grid."""
    rows, K = x.shape
    N = w.shape[1]
    if rows >= tm_max:
        tm = tm_max
    else:
        tm = ((rows + 7) // 8) * 8          # single tile, sublane aligned
    xp = _pad_rows(x, tm)
    rows_p = xp.shape[0]

    out = pl.pallas_call(
        _matmul_bias_kernel,
        out_shape=jax.ShapeDtypeStruct((rows_p, N), out_dtype),
        grid_spec=pltpu.PrefetchScalarGridSpec(
            num_scalar_prefetch=0,
            grid=(rows_p // tm,),
            in_specs=[
                pl.BlockSpec((tm, K), lambda i: (i, 0)),
                pl.BlockSpec((K, N), lambda i: (0, 0)),
                pl.BlockSpec((1, N), lambda i: (0, 0)),
            ],
            out_specs=pl.BlockSpec((tm, N), lambda i: (i, 0)),
        ),
        compiler_params=pltpu.CompilerParams(
            dimension_semantics=("parallel",)),
    )(xp, w, b)
    return out[:rows]


# ---------------------------------------------------------------------------
# Phase R kernel: chunk of TT timesteps of the leaky-integrator recurrence
#   h_t = (1 - alpha) * h_{t-1} + alpha * relu(U[t] + h_{t-1} @ w_hh)
# ---------------------------------------------------------------------------
def _recurrent_kernel(alpha, tt,
                      u_ref,        # (TT, B, n_hid)  precomputed input path
                      w_hh_ref,     # (n_hid, n_hid)
                      hid_ref,      # (TT, B, n_hid)  hidden states out
                      h_scratch):   # (B, n_hid)      carried hidden state
    c = pl.program_id(0)

    @pl.when(c == 0)
    def _():
        h_scratch[...] = jnp.zeros_like(h_scratch)

    w_hh = w_hh_ref[...]
    u = u_ref[...]                       # (TT, B, n_hid), f32
    h = h_scratch[...]

    # TT is a small static Python int: fully unrolled with static indices.
    for t in range(tt):
        pre = u[t] + jnp.dot(h, w_hh, preferred_element_type=jnp.float32)
        h = (1.0 - alpha) * h + alpha * jnp.maximum(pre, 0.0)
        hid_ref[t] = h.astype(hid_ref.dtype)

    h_scratch[...] = h


# ---------------------------------------------------------------------------
# Wrapper: full RecurrentNet forward
# ---------------------------------------------------------------------------
def recurrent_net_forward(input_signal, params, t_constant, tt=32):
    """input_signal: (B, T, n_in) -> (hidden_list (B,T,n_hid), output_list (B,T,n_out))."""
    B, T, n_in = input_signal.shape
    n_hid = params["w_in"].shape[1]
    n_out = params["w_out"].shape[1]
    dtype = input_signal.dtype
    f32 = jnp.float32

    # Fused non-recurrent input path (tiny weight fold, done once in XLA):
    #   (x @ w_in + b_in) @ w_ih + b_ih + b_hh
    # = x @ (w_in @ w_ih) + (b_in @ w_ih + b_ih + b_hh)
    w_u = params["w_in"].astype(f32) @ params["w_ih"].astype(f32)
    b_u = (params["b_in"].astype(f32) @ params["w_ih"].astype(f32)
           + params["b_ih"].astype(f32) + params["b_hh"].astype(f32))

    tt = max(1, min(tt, T))
    T_pad = ((T + tt - 1) // tt) * tt

    # time-major, like input_signal.permute(1, 0, 2) in the PyTorch forward
    x_tbi = jnp.transpose(input_signal, (1, 0, 2)).astype(f32)      # (T, B, n_in)
    if T_pad != T:
        x_tbi = jnp.pad(x_tbi, ((0, T_pad - T), (0, 0), (0, 0)))

    # ---- Phase A (parallel): U for all timesteps in one big matmul --------
    u = _matmul_bias(x_tbi.reshape(T_pad * B, n_in), w_u, b_u, f32)
    u = u.reshape(T_pad, B, n_hid)

    # ---- Phase R (sequential): chunked recurrence --------------------------
    kernel = functools.partial(_recurrent_kernel, float(t_constant), tt)
    hid_tm = pl.pallas_call(
        kernel,
        out_shape=jax.ShapeDtypeStruct((T_pad, B, n_hid), f32),
        grid_spec=pltpu.PrefetchScalarGridSpec(
            num_scalar_prefetch=0,
            grid=(T_pad // tt,),
            in_specs=[
                pl.BlockSpec((tt, B, n_hid), lambda c: (c, 0, 0)),   # U chunk
                pl.BlockSpec((n_hid, n_hid), lambda c: (0, 0)),      # w_hh
            ],
            out_specs=pl.BlockSpec((tt, B, n_hid), lambda c: (c, 0, 0)),
            scratch_shapes=[pltpu.VMEM((B, n_hid), f32)],
        ),
        compiler_params=pltpu.CompilerParams(
            dimension_semantics=("arbitrary",)),   # sequential recurrence
    )(u, params["w_hh"].astype(f32))

    # ---- Phase B (parallel): out_layer as one big matmul -------------------
    out_flat = _matmul_bias(hid_tm.reshape(T_pad * B, n_hid),
                            params["w_out"].astype(f32),
                            params["b_out"].astype(f32), f32)
    out_tm = out_flat.reshape(T_pad, B, n_out)

    # back to batch-major, like the final permute(1, 0, 2)
    hidden_list = jnp.transpose(hid_tm[:T], (1, 0, 2)).astype(dtype)
    output_list = jnp.transpose(out_tm[:T], (1, 0, 2)).astype(dtype)
    return hidden_list, output_list


# ---------------------------------------------------------------------------
# Params / reference / test
# ---------------------------------------------------------------------------
def init_params(key, n_in, n_hid, n_out, dtype=jnp.float32):
    """Deterministic init; weights stored pre-transposed for `x @ W`."""
    ks = jax.random.split(key, 8)
    u = lambda k, shape, bound: jax.random.uniform(
        k, shape, dtype, minval=-bound, maxval=bound)
    b_in_lay = 1.0 / (n_in ** 0.5)
    b_hid = 1.0 / (n_hid ** 0.5)
    return {
        "w_in":  u(ks[0], (n_in,  n_hid), b_in_lay),
        "b_in":  u(ks[1], (1,     n_hid), b_in_lay),
        "w_ih":  u(ks[2], (n_hid, n_hid), b_hid),
        "b_ih":  u(ks[3], (1,     n_hid), b_hid),
        "w_hh":  u(ks[4], (n_hid, n_hid), b_hid),
        "b_hh":  u(ks[5], (1,     n_hid), b_hid),
        "w_out": u(ks[6], (n_hid, n_out), b_hid),
        "b_out": u(ks[7], (1,     n_out), b_hid),
    }


def _reference_forward(input_signal, params, t_constant):
    """Pure-JAX reference (lax.scan) mirroring the PyTorch forward exactly."""
    B, T, _ = input_signal.shape
    n_hid = params["w_in"].shape[1]
    x_tbi = jnp.transpose(input_signal, (1, 0, 2))
    h0 = jnp.zeros((B, n_hid), jnp.float32)

    def step(h, x_t):
        x_proj = x_t @ params["w_in"] + params["b_in"]
        pre = (x_proj @ params["w_ih"] + params["b_ih"]
               + h @ params["w_hh"] + params["b_hh"])
        h_new = (1.0 - t_constant) * h + t_constant * jnp.maximum(pre, 0.0)
        out = h_new @ params["w_out"] + params["b_out"]
        return h_new, (h_new, out)

    _, (hid_tm, out_tm) = jax.lax.scan(step, h0, x_tbi)
    return jnp.transpose(hid_tm, (1, 0, 2)), jnp.transpose(out_tm, (1, 0, 2))


if __name__ == "__main__":
    # Small shapes consistent with the module: (batch, seq_len, n_in)
    B, T, N_IN, N_HID, N_OUT = 2, 8, 16, 32, 4
    T_CONSTANT = 0.1

    key = jax.random.PRNGKey(0)
    k_params, k_x = jax.random.split(key)
    params = init_params(k_params, N_IN, N_HID, N_OUT)
    x = jax.random.normal(k_x, (B, T, N_IN), jnp.float32)

    hidden_list, output_list = recurrent_net_forward(x, params, T_CONSTANT)
    jax.block_until_ready((hidden_list, output_list))

    # sanity-check against the pure-JAX reference
    hid_ref, out_ref = _reference_forward(x, params, T_CONSTANT)
    assert hidden_list.shape == (B, T, N_HID)
    assert output_list.shape == (B, T, N_OUT)
    assert jnp.allclose(hidden_list, hid_ref, atol=1e-4, rtol=1e-4)
    assert jnp.allclose(output_list, out_ref, atol=1e-4, rtol=1e-4)

    print("KERNEL_OK")
</pallas_src>

<mosaic_0001>
module attributes {stable_mosaic.version = 11 : i64} {
  func.func @_matmul_bias_kernel(%arg0: i32, %arg1: memref<16x16xf32, #tpu.memory_space<vmem>>, %arg2: memref<16x32xf32, #tpu.memory_space<vmem>>, %arg3: memref<1x32xf32, #tpu.memory_space<vmem>>, %arg4: memref<16x32xf32, #tpu.memory_space<vmem>>) attributes {dimension_semantics = [#tpu.dimension_semantics<parallel>], iteration_bounds = array<i64: 1>, scalar_prefetch = 0 : i64, scratch_operands = 0 : i64, tpu.core_type = #tpu.core_type<tc>, window_params = [{transform_indices = @transform_0, window_bounds = array<i64: 16, 16>}, {pipeline_mode = #tpu.pipeline_mode<synchronous>, transform_indices = @transform_1, window_bounds = array<i64: 16, 32>}, {pipeline_mode = #tpu.pipeline_mode<synchronous>, transform_indices = @transform_2, window_bounds = array<i64: 1, 32>}, {transform_indices = @transform_3, window_bounds = array<i64: 16, 32>}]} {
    %c0 = arith.constant 0 : index
    %c0_0 = arith.constant 0 : index
    %0 = vector.load %arg1[%c0, %c0_0] : memref<16x16xf32, #tpu.memory_space<vmem>>, vector<16x16xf32>
    %c0_1 = arith.constant 0 : index
    %c0_2 = arith.constant 0 : index
    %1 = vector.load %arg2[%c0_1, %c0_2] : memref<16x32xf32, #tpu.memory_space<vmem>>, vector<16x32xf32>
    %cst = arith.constant dense<0.000000e+00> : vector<16x32xf32>
    %2 = tpu.matmul %0, %1, %cst {dimension_numbers = #tpu.dot_dimension_numbers<[1], [0], [0], [1], [0, 0, 1, 1], [], []>} : vector<16x16xf32>, vector<16x32xf32>, vector<16x32xf32> -> vector<16x32xf32>
    %c0_3 = arith.constant 0 : index
    %c0_4 = arith.constant 0 : index
    %3 = vector.load %arg3[%c0_3, %c0_4] : memref<1x32xf32, #tpu.memory_space<vmem>>, vector<1x32xf32>
    %4 = vector.broadcast %3 : vector<1x32xf32> to vector<16x32xf32>
    %5 = arith.addf %2, %4 : vector<16x32xf32>
    %c0_5 = arith.constant 0 : index
    %c0_6 = arith.constant 0 : index
    %6 = vector.load %arg4[%c0_5, %c0_6] : memref<16x32xf32, #tpu.memory_space<vmem>>, vector<16x32xf32>
    tpu.vector_store %arg4[%c0_5, %c0_6], %5 {strides = array<i32>} : memref<16x32xf32, #tpu.memory_space<vmem>>, vector<16x32xf32>,
    return
  }
  func.func @transform_0(%arg0: i32) -> (i32, i32) {
    %c0_i32 = arith.constant 0 : i32
    %c0_i32_0 = arith.constant 0 : i32
    return %arg0, %c0_i32 : i32, i32
  }
  func.func @transform_1(%arg0: i32) -> (i32, i32) {
    %c0_i32 = arith.constant 0 : i32
    %c0_i32_0 = arith.constant 0 : i32
    %c0_i32_1 = arith.constant 0 : i32
    return %c0_i32, %c0_i32_0 : i32, i32
  }
  func.func @transform_2(%arg0: i32) -> (i32, i32) {
    %c0_i32 = arith.constant 0 : i32
    %c0_i32_0 = arith.constant 0 : i32
    %c0_i32_1 = arith.constant 0 : i32
    return %c0_i32, %c0_i32_0 : i32, i32
  }
  func.func @transform_3(%arg0: i32) -> (i32, i32) {
    %c0_i32 = arith.constant 0 : i32
    %c0_i32_0 = arith.constant 0 : i32
    return %arg0, %c0_i32 : i32, i32
  }
}

</mosaic_0001>

<llo_original>
// kernel: tpu_custom_call.1
$region0: #{tpu_custom_call.1}
  #allocation0 [shape = 'u32[]', space=smem, size = 0x4, offset = 0x4, fixed_abs, tag = 'smem constant byte address 0x4 - core index']
  #allocation1 [shape = 'u32[72,128]{1,0:T(1,128)}', space=vmem, size = 0x9000, scoped, tag = 'internal scratch']
  %s0 = inlined_call_operand.hbm [shape: f32[16,16], index: 0, kind: input, shape index: {}]
  %s1 = inlined_call_operand.hbm [shape: f32[16,32], index: 1, kind: input, shape index: {}]
  %s2 = inlined_call_operand.vmem [shape: f32[1,32], index: 2, kind: input, shape index: {}]
  %s3 = inlined_call_operand.hbm [shape: f32[16,32], index: 3, kind: output, shape index: {}]
  %s4 = sld [smem:[#allocation0]]
  $region30: #{tpu_custom_call.1} parent=0
    _
  %s6 = ssub.s32 1, %s4
  %s7 = scalar_select 0, %s6, %s4
  $region1: #{tpu_custom_call.1} parent=0
    #allocation2 [shape = 'u8[8192]{0}', space=vmem, size = 0x2000, scoped, tag = 'input window, operand 0, single buffered']
    #allocation3 [shape = 's32[1]{0}', space=sflag, size = 0x4, scoped, tag = 'scoped memory for tpu_custom_call.1']
    #allocation4 [shape = 's32[1]{0}', space=sflag, size = 0x4, scoped, tag = 'scoped memory for tpu_custom_call.1']
    #allocation5 [shape = 'u8[8192]{0}', space=vmem, size = 0x2000, scoped, tag = 'input window, operand 1, single buffered']
    #allocation6 [shape = 's32[1]{0}', space=sflag, size = 0x4, scoped, tag = 'scoped memory for tpu_custom_call.1']
    #allocation7 [shape = 'u8[8192]{0}', space=vmem, size = 0x2000, scoped, tag = 'output window, operand 0, single buffered']
    %8 = vsyncpa [#allocation3], 0
    %9 = vsyncpa [#allocation6], 0
    %10 = vsyncpa [#allocation4], 0
    // Predicated region
    $region2: #{tpu_custom_call.1} parent=1 // pred_check
      _
    $region3: #{tpu_custom_call.1} parent=1 // pred_check_branch
      %12 = sbr.rel (0) target = $region5
    $region4: #{tpu_custom_call.1} parent=1 // pred_region
      %14 = vsyncadd [#allocation3], 0
      %s15 = sshll.u32 %s0, 4
      %s16 = int_to_ptr.hbm [resolvable:$true] %s15
      %s17 = sshll.u32 [#allocation2], 4
      %s18 = int_to_ptr.vmem [resolvable:$true] %s17
      %23 = dma.hbm_to_vmem [thread:$0]  %s16, 256, %s18, [#allocation3], 128, 128, 8
    $region5: #{tpu_custom_call.1} parent=1 // pred_fallthru
      _
    // Predicated region
    $region6: #{tpu_custom_call.1} parent=1 // pred_check
      _
    $region7: #{tpu_custom_call.1} parent=1 // pred_check_branch
      %25 = sbr.rel (0) target = $region9
    $region8: #{tpu_custom_call.1} parent=1 // pred_region
      %27 = vsyncadd [#allocation6], 0
      %s28 = sshll.u32 %s1, 4
      %s29 = int_to_ptr.hbm [resolvable:$true] %s28
      %s30 = sshll.u32 [#allocation5], 4
      %s31 = int_to_ptr.vmem [resolvable:$true] %s30
      %36 = dma.hbm_to_vmem [thread:$0]  %s29, 256, %s31, [#allocation6], 128, 128, 8
    $region9: #{tpu_custom_call.1} parent=1 // pred_fallthru
      _
    // Predicated region
    $region10: #{tpu_custom_call.1} parent=1 // pred_check
      _
    $region11: #{tpu_custom_call.1} parent=1 // pred_check_branch
      %38 = sbr.rel (0) target = $region13
    $region12: #{tpu_custom_call.1} parent=1 // pred_region
      _
    $region13: #{tpu_custom_call.1} parent=1 // pred_fallthru
      _
    // Predicated region
    $region14: #{tpu_custom_call.1} parent=1 // pred_check
      _
    $region15: #{tpu_custom_call.1} parent=1 // pred_check_branch
      %40 = sbr.rel (0) target = $region17
    $region16: #{tpu_custom_call.1} parent=1 // pred_region
      %42 = dma.done [#allocation3], 256
    $region17: #{tpu_custom_call.1} parent=1 // pred_fallthru
      _
    // Predicated region
    $region18: #{tpu_custom_call.1} parent=1 // pred_check
      _
    $region19: #{tpu_custom_call.1} parent=1 // pred_check_branch
      %44 = sbr.rel (0) target = $region21
    $region20: #{tpu_custom_call.1} parent=1 // pred_region
      %46 = dma.done [#allocation6], 256
    $region21: #{tpu_custom_call.1} parent=1 // pred_fallthru
      _
    %v47 = vld [vmem:[#allocation2] sm:$0xff]
    %v48 = vld [vmem:[#allocation2 + $0x8] sm:$0xff]
    %v49 = vld [vmem:[#allocation5] sm:$0xff]
    %v50 = vld [vmem:[#allocation5 + $0x8] sm:$0xff]
    %v51 = vld [vmem:[%s2] sm:$0x1]
    %v53 = vperm.slane %v51, 0
    %vm55 = vcmask 130048
    %v57 = vsel %vm55, %v47, 0
    %v60 = vsel %vm55, %v48, 0
    %62 = vmatpush.msra.mxu0 0.0
    %63 = vmatpush.msra.mxu0 0.0
    %64 = vmatpush.msra.mxu0 0.0
    %65 = vmatpush.msra.mxu0 0.0
    %66 = vmatpush.msra.mxu0 0.0
    %67 = vmatpush.msra.mxu0 0.0
    %68 = vmatpush.msra.mxu0 0.0
    %69 = vmatpush.msra.mxu0 0.0
    %70 = vmatpush.msra.mxu0 0.0
    %71 = vmatpush.msra.mxu0 0.0
    %72 = vmatpush.msra.mxu0 0.0
    %73 = vmatpush.msra.mxu0 0.0
    %74 = vmatpush.msra.mxu0 0.0
    %75 = vmatpush.msra.mxu0 0.0
    %76 = vmatpush.msra.mxu0 %v50
    %77 = vmatpush.msra.mxu0 %v49
    %78 = vmatmul.f32.gmra.mxu0 %v57
    %v79 = vpop.f32.mrf.mxu0
    %v80 = vadd.f32 %v53, %v79
    %81 = vmatmul.f32.gmra.mxu0 %v60
    %v82 = vpop.f32.mrf.mxu0
    %v83 = vadd.f32 %v53, %v82
    %84 = vdwg.mxu0
    %vm85 = vcmask 261120
    %86 = vst.msk [vmem:[#allocation7] sm:$0xff] %vm85, %v80
    %87 = vst.msk [vmem:[#allocation7 + $0x8] sm:$0xff] %vm85, %v83
    // Predicated region
    $region22: #{tpu_custom_call.1} parent=1 // pred_check
      _
    $region23: #{tpu_custom_call.1} parent=1 // pred_check_branch
      %89 = sbr.rel (0) target = $region25
    $region24: #{tpu_custom_call.1} parent=1 // pred_region
      %91 = vsyncadd [#allocation4], 0
      %s92 = sshll.u32 [#allocation7], 4
      %s93 = int_to_ptr.vmem [resolvable:$true] %s92
      %s94 = sshll.u32 %s3, 4
      %s95 = int_to_ptr.hbm [resolvable:$true] %s94
      %100 = dma.vmem_to_hbm [thread:$0]  %s93, 256, %s95, [#allocation4], 128, 128, 8
    $region25: #{tpu_custom_call.1} parent=1 // pred_fallthru
      _
    // Predicated region
    $region26: #{tpu_custom_call.1} parent=1 // pred_check
      _
    $region27: #{tpu_custom_call.1} parent=1 // pred_check_branch
      %102 = sbr.rel (0) target = $region29
    $region28: #{tpu_custom_call.1} parent=1 // pred_region
      %104 = dma.done [#allocation4], 256
    $region29: #{tpu_custom_call.1} parent=1 // pred_fallthru
      _
    %105 = vsyncpa [#allocation3], 1
    %106 = vsyncpa [#allocation6], 1
    %107 = vsyncpa [#allocation4], 1

</llo_original>
